<compile_context>
chip_gen: v5e
topology: v5e:2x2
jax: 0.10.0
libtpu: 0.0.40
codegen_flags: <defaults>
</compile_context>

<pallas_src>
import functools
import math

import jax
import jax.numpy as jnp
from jax.experimental import pallas as pl
from jax.experimental.pallas import tpu as pltpu


# Below this M*K*N, XLA fusion beats a pallas_call launch (padding + ~us overhead).
_SMALL_GEMM_MKN = 1 << 18


# ----------------------------------------------------------------------------
# Helpers
# ----------------------------------------------------------------------------
def _round_up(x, m):
    return ((x + m - 1) // m) * m


def _pad2d(a, rows, cols):
    r, c = a.shape
    if r == rows and c == cols:
        return a
    return jnp.pad(a, ((0, rows - r), (0, cols - c)))


def _pick_tile(dim, unit, cap):
    """Largest multiple of `unit` that divides `dim` and is <= cap (dim % unit == 0)."""
    best = unit
    t = unit
    limit = min(dim, cap)
    while t <= limit:
        if dim % t == 0:
            best = t
        t += unit
    return best


def _apply_act(y, activation):
    if activation == "tanh":
        return jnp.tanh(y)
    if activation == "relu":
        return jnp.maximum(y, 0.0)
    return y


@functools.lru_cache(maxsize=1)
def _vmem_limit_bytes():
    # Generation-aware: ~3/4 of physical VMEM (~48 MiB on v7x's 64 MiB,
    # 96 MiB on v5e/v6e's 128 MiB), capped at 96 MiB.
    try:
        cap = int(pltpu.get_tpu_info().vmem_capacity_bytes)
    except Exception:
        cap = 64 * 1024 * 1024
    return int(min(cap * 3 // 4, 96 * 1024 * 1024))


# ----------------------------------------------------------------------------
# Pallas kernels: act(x @ W + b), f32 accumulation, no scratch accumulator
# ----------------------------------------------------------------------------
def _gemm_bias_act_single_k_kernel(x_ref, w_ref, b_ref, o_ref, *, activation):
    # Whole K in one block: fuse dot + bias + activation, store once.
    y = jnp.dot(x_ref[...], w_ref[...], preferred_element_type=jnp.float32)
    y = y + b_ref[...]                       # (1, tn) bias broadcasts over rows
    o_ref[...] = _apply_act(y, activation).astype(o_ref.dtype)


def _gemm_bias_act_multi_k_kernel(x_ref, w_ref, b_ref, o_ref, *, activation):
    # Output block is resident across the (arbitrary) k axis; accumulate in place.
    k = pl.program_id(2)
    partial = jnp.dot(x_ref[...], w_ref[...], preferred_element_type=jnp.float32)

    @pl.when(k == 0)
    def _first():
        o_ref[...] = partial

    @pl.when(k > 0)
    def _accum():
        o_ref[...] += partial

    @pl.when(k == pl.num_programs(2) - 1)
    def _finalize():
        o_ref[...] = _apply_act(o_ref[...] + b_ref[...], activation).astype(o_ref.dtype)


def _pallas_linear_act(x, w_p, b_p, n_true, activation, *, tk_cap=2048):
    """act(x @ W + b) through a tiled MXU pipeline.

    x:   [M, K]   float (cast to bf16 before padding)
    w_p: [Kp, Np] bf16, pre-padded to multiples of 128 (cached at module init)
    b_p: [1, Np]  f32,  pre-padded
    Returns [M, n_true] f32.
    """
    M, K = x.shape
    Kp, Np = w_p.shape
    assert Kp >= K and Kp % 128 == 0 and Np % 128 == 0

    # bf16 packs two rows per sublane: align M to 16. Cast BEFORE padding.
    Mp = _round_up(max(M, 1), 16)
    xp = _pad2d(x.astype(jnp.bfloat16), Mp, Kp)

    tm = _pick_tile(Mp, 16, 512)
    tn = _pick_tile(Np, 128, 512)
    tk = _pick_tile(Kp, 128, tk_cap)

    # Guarantee >=2 blocks on a parallel axis so v7x's second TensorCore gets work.
    if (Mp // tm) * (Np // tn) == 1:
        if Np // 128 >= 2:
            tn = _pick_tile(Np, 128, Np // 2)
        elif Mp // 16 >= 2:
            tm = _pick_tile(Mp, 16, Mp // 2)

    m_tiles, n_tiles, k_tiles = Mp // tm, Np // tn, Kp // tk

    cost = pl.CostEstimate(
        flops=2 * Mp * Np * Kp,
        transcendentals=Mp * Np if activation == "tanh" else 0,
        bytes_accessed=xp.size * 2 + w_p.size * 2 + b_p.size * 4 + Mp * Np * 4,
    )

    if k_tiles == 1:
        out = pl.pallas_call(
            functools.partial(_gemm_bias_act_single_k_kernel, activation=activation),
            out_shape=jax.ShapeDtypeStruct((Mp, Np), jnp.float32),
            grid_spec=pltpu.PrefetchScalarGridSpec(
                num_scalar_prefetch=0,
                grid=(m_tiles, n_tiles),
                in_specs=[
                    pl.BlockSpec((tm, Kp), lambda i, j: (i, 0)),
                    pl.BlockSpec((Kp, tn), lambda i, j: (0, j)),
                    pl.BlockSpec((1, tn), lambda i, j: (0, j)),
                ],
                out_specs=pl.BlockSpec((tm, tn), lambda i, j: (i, j)),
            ),
            compiler_params=pltpu.CompilerParams(
                dimension_semantics=("parallel", "parallel"),
                vmem_limit_bytes=_vmem_limit_bytes(),
            ),
            cost_estimate=cost,
        )(xp, w_p, b_p)
    else:
        out = pl.pallas_call(
            functools.partial(_gemm_bias_act_multi_k_kernel, activation=activation),
            out_shape=jax.ShapeDtypeStruct((Mp, Np), jnp.float32),
            grid_spec=pltpu.PrefetchScalarGridSpec(
                num_scalar_prefetch=0,
                grid=(m_tiles, n_tiles, k_tiles),
                in_specs=[
                    pl.BlockSpec((tm, tk), lambda i, j, k: (i, k)),
                    pl.BlockSpec((tk, tn), lambda i, j, k: (k, j)),
                    pl.BlockSpec((1, tn), lambda i, j, k: (0, j)),
                ],
                out_specs=pl.BlockSpec((tm, tn), lambda i, j, k: (i, j)),
            ),
            compiler_params=pltpu.CompilerParams(
                dimension_semantics=("parallel", "parallel", "arbitrary"),
                vmem_limit_bytes=_vmem_limit_bytes(),
            ),
            cost_estimate=cost,
        )(xp, w_p, b_p)

    return out[:M, :n_true]


# ----------------------------------------------------------------------------
# im2col for the conv path (patch extraction in XLA, GEMM stays in Pallas)
# ----------------------------------------------------------------------------
def _im2col(x, k, s):
    """x: [B, C, H, W] -> ([B*OH*OW, C*k*k], OH, OW); feature order (C, kh, kw)."""
    B, C, H, W = x.shape
    OH = (H - k) // s + 1
    OW = (W - k) // s + 1
    cols = []
    for di in range(k):
        for dj in range(k):
            patch = x[:, :, di:di + s * OH:s, dj:dj + s * OW:s]  # [B, C, OH, OW]
            cols.append(patch)
    cols = jnp.stack(cols, axis=0).reshape(k, k, B, C, OH, OW)
    cols = cols.transpose(2, 4, 5, 3, 0, 1)  # [B, OH, OW, C, k, k]
    return cols.reshape(B * OH * OW, C * k * k), OH, OW
    # TODO(synk): fully fuse patch extraction into the kernel (memory_space=pl.ANY
    # + strided make_async_copy per M tile) to avoid the k*k im2col HBM inflation.


# ----------------------------------------------------------------------------
# Module (parameters initialized deterministically in-script)
# ----------------------------------------------------------------------------
class SpinalNetworkModule:
    MODULE_TYPES = [
        "continuous_reinforcement",
        "continuous_reinforcement_final",
        "continuous_reinforcement_vision",
        "value_module",
        "value_module_vision",
        "value_module_final",
        "continuous_reinforcement_vision_final",
    ]

    def __init__(self, dim_1, dim_2, module_type="continuous_reinforcement",
                 optional_args=None, key=None, force_pallas=False):
        if module_type not in self.MODULE_TYPES:
            raise Exception("{} is not a module type".format(module_type))
        if key is None:
            key = jax.random.PRNGKey(0)
        self.dim_1 = dim_1
        self.dim_2 = dim_2
        self.module_type = module_type
        self.force_pallas = force_pallas
        optional_args = optional_args or {}

        kw, kb, kc = jax.random.split(key, 3)

        if module_type in ("continuous_reinforcement",
                           "continuous_reinforcement_vision_final"):
            std = math.sqrt(2.0 / (dim_1 + dim_2))           # xavier_normal
            self.w = std * jax.random.normal(kw, (dim_1, dim_2), jnp.float32)
            if module_type == "continuous_reinforcement":
                self.b = jnp.zeros((1, dim_2), jnp.float32)  # bias zeroed in torch ref
            else:
                bound = 1.0 / math.sqrt(dim_1)               # torch Linear default bias
                self.b = jax.random.uniform(kb, (1, dim_2), jnp.float32, -bound, bound)
            self.activation = ("tanh" if module_type == "continuous_reinforcement"
                               else "none")
            self._cache_linear()

        elif module_type == "value_module":
            self.w = jax.random.uniform(kw, (dim_1, dim_2), jnp.float32, -0.003, 0.003)
            self.b = jax.random.uniform(kb, (1, dim_2), jnp.float32, -0.003, 0.003)
            self.activation = "tanh"
            self._cache_linear()

        elif module_type == "value_module_final":
            self.w = jax.random.uniform(kw, (dim_1, 1), jnp.float32, -0.003, 0.003)
            self.b = jax.random.uniform(kb, (1, 1), jnp.float32, -0.003, 0.003)
            self.activation = "none"
            self._cache_linear()

        elif module_type == "continuous_reinforcement_final":
            std = math.sqrt(2.0 / (dim_1 + dim_2))
            self.w = std * jax.random.normal(kw, (dim_1, dim_2), jnp.float32)
            self.b = jnp.zeros((1, dim_2), jnp.float32)
            self.log_std_lin = jnp.full((1, dim_2), -0.5, jnp.float32)
            self.log_std_min, self.log_std_max = -20.0, 2.0
            self.activation = "none"
            self._cache_linear()

        elif module_type in ("continuous_reinforcement_vision", "value_module_vision"):
            self.kernel = optional_args.get("kernel", 5)
            self.stride = optional_args.get("stride", 2)
            self.pooling = optional_args.get("pooling", False)
            self.pool_kernel = optional_args.get("pooling_kernel", 2)
            self.activation = optional_args.get("activation", "relu")
            fan_in = dim_1 * self.kernel * self.kernel
            bound = 1.0 / math.sqrt(fan_in)
            # conv weight OIHW (PyTorch convention), deterministic synthetic init
            self.conv_w = jax.random.uniform(
                kc, (dim_2, dim_1, self.kernel, self.kernel), jnp.float32,
                -bound, bound)
            self.conv_b = jax.random.uniform(kb, (dim_2,), jnp.float32, -bound, bound)
            # Cache the bf16, lane/feature-padded GEMM view of the conv params.
            ckk = dim_1 * self.kernel * self.kernel
            Kp, Np = _round_up(ckk, 128), _round_up(dim_2, 128)
            w2d = self.conv_w.reshape(dim_2, ckk).T          # [CKK, O], order (C,kh,kw)
            self.conv_w_p = _pad2d(w2d.astype(jnp.bfloat16), Kp, Np)
            self.conv_b_p = _pad2d(self.conv_b.reshape(1, dim_2).astype(jnp.float32),
                                   1, Np)

    # ---- param caching: pad to (128-aligned K/N) once, in bf16 (cast-then-pad) ----
    def _cache_linear(self):
        K, N = self.w.shape
        Kp, Np = _round_up(K, 128), _round_up(N, 128)
        self.w_p = _pad2d(self.w.astype(jnp.bfloat16), Kp, Np)
        self.b_p = _pad2d(self.b.astype(jnp.float32), 1, Np)

    # ---- dense path (with small-shape XLA fallback) ----
    def _dense(self, x, activation):
        M, K = x.shape
        N = self.w.shape[1]
        if (not self.force_pallas) and M * K * N < _SMALL_GEMM_MKN:
            return _apply_act(x @ self.w + self.b, activation)
        return _pallas_linear_act(x, self.w_p, self.b_p, N, activation)

    # ---- conv path ----
    def _conv(self, x):
        B, C, H, W = x.shape
        k, s = self.kernel, self.stride
        OH = (H - k) // s + 1
        OW = (W - k) // s + 1
        M, K, N = B * OH * OW, C * k * k, self.dim_2

        if (not self.force_pallas) and M * K * N < _SMALL_GEMM_MKN:
            conv = jax.lax.conv_general_dilated(
                x, self.conv_w, window_strides=(s, s), padding="VALID",
                dimension_numbers=("NCHW", "OIHW", "NCHW"))
            conv = conv + self.conv_b[None, :, None, None]
            if self.pooling:
                pk = self.pool_kernel
                conv = jax.lax.reduce_window(conv, -jnp.inf, jax.lax.max,
                                             (1, 1, pk, pk), (1, 1, pk, pk), "VALID")
            return _apply_act(conv, self.activation)

        # Cast to bf16 BEFORE im2col so the k*k-inflated patch stream is half-width.
        patches, OH, OW = _im2col(x.astype(jnp.bfloat16), k, s)
        # Activation fused into the GEMM (relu/tanh are monotone -> commute w/ max-pool).
        out = _pallas_linear_act(patches, self.conv_w_p, self.conv_b_p, N,
                                 self.activation)
        # TODO(synk): return NHWC (skip this transpose) if the consumer accepts it;
        # kept NCHW to match the PyTorch module's conv output layout.
        out = out.reshape(B, OH, OW, N).transpose(0, 3, 1, 2)
        if self.pooling:
            # TODO(synk): Pallas max-pool; XLA reduce_window keeps semantics for now.
            pk = self.pool_kernel
            out = jax.lax.reduce_window(out, -jnp.inf, jax.lax.max,
                                        (1, 1, pk, pk), (1, 1, pk, pk), "VALID")
        return out

    def forward(self, x):
        mt = self.module_type
        if mt in ("value_module", "continuous_reinforcement"):
            return self._dense(x, self.activation)

        if mt in ("value_module_final", "continuous_reinforcement_vision_final"):
            return self._dense(x, "none")

        if mt in ("continuous_reinforcement_vision", "value_module_vision"):
            return self._conv(x)

        if mt == "continuous_reinforcement_final":
            mean = self._dense(x, "none")
            # log_std is rank-1: clamp the (1, N) vector and broadcast in the wrapper.
            log_std = jnp.broadcast_to(
                jnp.clip(self.log_std_lin, self.log_std_min, self.log_std_max),
                mean.shape)
            return mean, log_std

        raise Exception("unreachable")


# ----------------------------------------------------------------------------
# Demo / self-test
# ----------------------------------------------------------------------------
if __name__ == "__main__":
    key = jax.random.PRNGKey(0)
    kx, km1, km2, km3, kxv, kmv, kxm = jax.random.split(key, 7)

    # --- 1. continuous_reinforcement (tanh(linear(x))), forced through Pallas ---
    B, D1, D2 = 2, 32, 16
    x = jax.random.normal(kx, (B, D1), jnp.float32)
    mod = SpinalNetworkModule(D1, D2, "continuous_reinforcement", key=km1,
                              force_pallas=True)
    out = mod.forward(x)
    jax.block_until_ready(out)
    ref = jnp.tanh(x @ mod.w + mod.b)
    assert out.shape == (B, D2)
    assert jnp.allclose(out, ref, atol=2e-2), "continuous_reinforcement mismatch"

    # --- 1b. tiny-shape XLA fallback path ---
    mod.force_pallas = False
    out_fb = mod.forward(x)
    jax.block_until_ready(out_fb)
    assert jnp.allclose(out_fb, ref, atol=1e-5), "small-shape fallback mismatch"

    # --- 2. final path: (mean, clamped log_std) ---
    mod_f = SpinalNetworkModule(D1, D2, "continuous_reinforcement_final", key=km2,
                                force_pallas=True)
    mean, log_std = mod_f.forward(x)
    jax.block_until_ready((mean, log_std))
    ref_mean = x @ mod_f.w + mod_f.b
    ref_ls = jnp.broadcast_to(jnp.clip(mod_f.log_std_lin, -20.0, 2.0), ref_mean.shape)
    assert jnp.allclose(mean, ref_mean, atol=2e-2)
    assert jnp.allclose(log_std, ref_ls, atol=1e-6)

    # --- 3. value head: N=1 output (padded to 128 lanes internally) ---
    mod_v1 = SpinalNetworkModule(D1, D2, "value_module_final", key=km3,
                                 force_pallas=True)
    val = mod_v1.forward(x)
    jax.block_until_ready(val)
    ref_val = x @ mod_v1.w + mod_v1.b
    assert val.shape == (B, 1)
    assert jnp.allclose(val, ref_val, atol=1e-3), "value_module_final mismatch"

    # --- 4. vision path: relu(conv2d(x)), NCHW input, kernel=5, stride=2 ---
    xc = jax.random.normal(kxv, (2, 4, 16, 16), jnp.float32)
    mod_v = SpinalNetworkModule(4, 8, "continuous_reinforcement_vision",
                                optional_args={"kernel": 5, "stride": 2}, key=kmv,
                                force_pallas=True)
    outv = mod_v.forward(xc)
    jax.block_until_ready(outv)
    ref_v = jax.lax.conv_general_dilated(
        xc, mod_v.conv_w, window_strides=(2, 2), padding="VALID",
        dimension_numbers=("NCHW", "OIHW", "NCHW"))
    ref_v = jnp.maximum(ref_v + mod_v.conv_b[None, :, None, None], 0.0)
    assert outv.shape == ref_v.shape == (2, 8, 6, 6)
    assert jnp.allclose(outv, ref_v, atol=3e-2), "vision path mismatch"

    # --- 5. medium shape: goes through the Pallas GEMM automatically ---
    Bm, Dm1, Dm2 = 64, 256, 128
    xm = jax.random.normal(kxm, (Bm, Dm1), jnp.float32)
    mod_m = SpinalNetworkModule(Dm1, Dm2, "value_module", key=km1)
    outm = mod_m.forward(xm)          # 64*256*128 > threshold -> Pallas path
    jax.block_until_ready(outm)
    refm = jnp.tanh(xm @ mod_m.w + mod_m.b)
    assert jnp.allclose(outm, refm, atol=2e-2), "value_module medium mismatch"

    # --- 6. multi-K accumulation kernel (tk_cap forces >1 K tiles) ---
    outk = _pallas_linear_act(xm, mod_m.w_p, mod_m.b_p, Dm2, "tanh", tk_cap=128)
    jax.block_until_ready(outk)
    assert jnp.allclose(outk, refm, atol=2e-2), "multi-K path mismatch"

    print("KERNEL_OK")
</pallas_src>

<mosaic_0001>
module attributes {stable_mosaic.version = 11 : i64} {
  func.func @_gemm_bias_act_single_k_kernel(%arg0: i32, %arg1: i32, %arg2: memref<16x128xbf16, #tpu.memory_space<vmem>>, %arg3: memref<128x128xbf16, #tpu.memory_space<vmem>>, %arg4: memref<1x128xf32, #tpu.memory_space<vmem>>, %arg5: memref<16x128xf32, #tpu.memory_space<vmem>>) attributes {dimension_semantics = [#tpu.dimension_semantics<parallel>, #tpu.dimension_semantics<parallel>], iteration_bounds = array<i64: 1, 1>, scalar_prefetch = 0 : i64, scratch_operands = 0 : i64, tpu.core_type = #tpu.core_type<tc>, window_params = [{transform_indices = @transform_0, window_bounds = array<i64: 16, 128>}, {transform_indices = @transform_1, window_bounds = array<i64: 128, 128>}, {transform_indices = @transform_2, window_bounds = array<i64: 1, 128>}, {transform_indices = @transform_3, window_bounds = array<i64: 16, 128>}]} {
    %c0 = arith.constant 0 : index
    %c0_0 = arith.constant 0 : index
    %0 = vector.load %arg2[%c0, %c0_0] : memref<16x128xbf16, #tpu.memory_space<vmem>>, vector<16x128xbf16>
    %c0_1 = arith.constant 0 : index
    %c0_2 = arith.constant 0 : index
    %1 = vector.load %arg3[%c0_1, %c0_2] : memref<128x128xbf16, #tpu.memory_space<vmem>>, vector<128x128xbf16>
    %cst = arith.constant dense<0.000000e+00> : vector<16x128xf32>
    %2 = tpu.matmul %0, %1, %cst {dimension_numbers = #tpu.dot_dimension_numbers<[1], [0], [0], [1], [0, 0, 1, 1], [], []>} : vector<16x128xbf16>, vector<128x128xbf16>, vector<16x128xf32> -> vector<16x128xf32>
    %c0_3 = arith.constant 0 : index
    %c0_4 = arith.constant 0 : index
    %3 = vector.load %arg4[%c0_3, %c0_4] : memref<1x128xf32, #tpu.memory_space<vmem>>, vector<1x128xf32>
    %4 = vector.broadcast %3 : vector<1x128xf32> to vector<16x128xf32>
    %5 = arith.addf %2, %4 : vector<16x128xf32>
    %6 = math.tanh %5 : vector<16x128xf32>
    %c0_5 = arith.constant 0 : index
    %c0_6 = arith.constant 0 : index
    %7 = vector.load %arg5[%c0_5, %c0_6] : memref<16x128xf32, #tpu.memory_space<vmem>>, vector<16x128xf32>
    tpu.vector_store %arg5[%c0_5, %c0_6], %6 {strides = array<i32>} : memref<16x128xf32, #tpu.memory_space<vmem>>, vector<16x128xf32>,
    return
  }
  func.func @transform_0(%arg0: i32, %arg1: i32) -> (i32, i32) {
    %c0_i32 = arith.constant 0 : i32
    %c0_i32_0 = arith.constant 0 : i32
    return %arg0, %c0_i32 : i32, i32
  }
  func.func @transform_1(%arg0: i32, %arg1: i32) -> (i32, i32) {
    %c0_i32 = arith.constant 0 : i32
    %c0_i32_0 = arith.constant 0 : i32
    return %c0_i32, %arg1 : i32, i32
  }
  func.func @transform_2(%arg0: i32, %arg1: i32) -> (i32, i32) {
    %c0_i32 = arith.constant 0 : i32
    %c0_i32_0 = arith.constant 0 : i32
    return %c0_i32, %arg1 : i32, i32
  }
  func.func @transform_3(%arg0: i32, %arg1: i32) -> (i32, i32) {
    %c0_i32 = arith.constant 0 : i32
    return %arg0, %arg1 : i32, i32
  }
}

</mosaic_0001>

<llo_original>
// kernel: tpu_custom_call.1
$region0: #{tpu_custom_call.1}
  #allocation0 [shape = 'u32[]', space=smem, size = 0x4, offset = 0x4, fixed_abs, tag = 'smem constant byte address 0x4 - core index']
  #allocation1 [shape = 'u32[72,128]{1,0:T(1,128)}', space=vmem, size = 0x9000, scoped, tag = 'internal scratch']
  %s0 = inlined_call_operand.hbm [shape: bf16[16,128], index: 0, kind: input, shape index: {}]
  %s1 = inlined_call_operand.hbm [shape: bf16[128,128], index: 1, kind: input, shape index: {}]
  %s2 = inlined_call_operand.vmem [shape: f32[1,128], index: 2, kind: input, shape index: {}]
  %s3 = inlined_call_operand.hbm [shape: f32[16,128], index: 3, kind: output, shape index: {}]
  %s4 = sld [smem:[#allocation0]]
  $region30: #{tpu_custom_call.1} parent=0
    _
  %s6 = ssub.s32 1, %s4
  %s7 = scalar_select 0, %s6, %s4
  $region1: #{tpu_custom_call.1} parent=0
    #allocation2 [shape = 'u8[4096]{0}', space=vmem, size = 0x1000, scoped, tag = 'input window, operand 0, single buffered']
    #allocation3 [shape = 's32[1]{0}', space=sflag, size = 0x4, scoped, tag = 'scoped memory for tpu_custom_call.1']
    #allocation4 [shape = 's32[1]{0}', space=sflag, size = 0x4, scoped, tag = 'scoped memory for tpu_custom_call.1']
    #allocation5 [shape = 'u8[32768]{0}', space=vmem, size = 0x8000, scoped, tag = 'input window, operand 1, single buffered']
    #allocation6 [shape = 's32[1]{0}', space=sflag, size = 0x4, scoped, tag = 'scoped memory for tpu_custom_call.1']
    #allocation7 [shape = 'u8[8192]{0}', space=vmem, size = 0x2000, scoped, tag = 'output window, operand 0, single buffered']
    %8 = vsyncpa [#allocation3], 0
    %9 = vsyncpa [#allocation6], 0
    %10 = vsyncpa [#allocation4], 0
    // Predicated region
    $region2: #{tpu_custom_call.1} parent=1 // pred_check
      _
    $region3: #{tpu_custom_call.1} parent=1 // pred_check_branch
      %12 = sbr.rel (0) target = $region5
    $region4: #{tpu_custom_call.1} parent=1 // pred_region
      %14 = vsyncadd [#allocation3], 0
      %s15 = sshll.u32 %s0, 4
      %s16 = int_to_ptr.hbm [resolvable:$true] %s15
      %s17 = sshll.u32 [#allocation2], 4
      %s18 = int_to_ptr.vmem [resolvable:$true] %s17
      %23 = dma.hbm_to_vmem [thread:$0]  %s16, 128, %s18, [#allocation3], 64, 64, 4
    $region5: #{tpu_custom_call.1} parent=1 // pred_fallthru
      _
    // Predicated region
    $region6: #{tpu_custom_call.1} parent=1 // pred_check
      _
    $region7: #{tpu_custom_call.1} parent=1 // pred_check_branch
      %25 = sbr.rel (0) target = $region9
    $region8: #{tpu_custom_call.1} parent=1 // pred_region
      %27 = vsyncadd [#allocation6], 0
      %s28 = sshll.u32 %s1, 4
      %s29 = int_to_ptr.hbm [resolvable:$true] %s28
      %s30 = sshll.u32 [#allocation5], 4
      %s31 = int_to_ptr.vmem [resolvable:$true] %s30
      %36 = dma.hbm_to_vmem [thread:$0]  %s29, 1024, %s31, [#allocation6], 64, 64, 4
    $region9: #{tpu_custom_call.1} parent=1 // pred_fallthru
      _
    // Predicated region
    $region10: #{tpu_custom_call.1} parent=1 // pred_check
      _
    $region11: #{tpu_custom_call.1} parent=1 // pred_check_branch
      %38 = sbr.rel (0) target = $region13
    $region12: #{tpu_custom_call.1} parent=1 // pred_region
      _
    $region13: #{tpu_custom_call.1} parent=1 // pred_fallthru
      _
    // Predicated region
    $region14: #{tpu_custom_call.1} parent=1 // pred_check
      _
    $region15: #{tpu_custom_call.1} parent=1 // pred_check_branch
      %40 = sbr.rel (0) target = $region17
    $region16: #{tpu_custom_call.1} parent=1 // pred_region
      %42 = dma.done [#allocation3], 128
    $region17: #{tpu_custom_call.1} parent=1 // pred_fallthru
      _
    // Predicated region
    $region18: #{tpu_custom_call.1} parent=1 // pred_check
      _
    $region19: #{tpu_custom_call.1} parent=1 // pred_check_branch
      %44 = sbr.rel (0) target = $region21
    $region20: #{tpu_custom_call.1} parent=1 // pred_region
      %46 = dma.done [#allocation6], 1024
    $region21: #{tpu_custom_call.1} parent=1 // pred_fallthru
      _
    %v47 = vld [vmem:[#allocation2] sm:$0xf]
    %v48 = vld [vmem:[#allocation2 + $0x4] sm:$0xf]
    %v49 = vld [vmem:[#allocation5] sm:$0xf]
    %v50 = vld [vmem:[#allocation5 + $0x4] sm:$0xf]
    %v51 = vld [vmem:[#allocation5 + $0x8] sm:$0xf]
    %v52 = vld [vmem:[#allocation5 + $0xc] sm:$0xf]
    %v53 = vld [vmem:[#allocation5 + $0x10] sm:$0xf]
    %v54 = vld [vmem:[#allocation5 + $0x14] sm:$0xf]
    %v55 = vld [vmem:[#allocation5 + $0x18] sm:$0xf]
    %v56 = vld [vmem:[#allocation5 + $0x1c] sm:$0xf]
    %v57 = vld [vmem:[#allocation5 + $0x20] sm:$0xf]
    %v58 = vld [vmem:[#allocation5 + $0x24] sm:$0xf]
    %v59 = vld [vmem:[#allocation5 + $0x28] sm:$0xf]
    %v60 = vld [vmem:[#allocation5 + $0x2c] sm:$0xf]
    %v61 = vld [vmem:[#allocation5 + $0x30] sm:$0xf]
    %v62 = vld [vmem:[#allocation5 + $0x34] sm:$0xf]
    %v63 = vld [vmem:[#allocation5 + $0x38] sm:$0xf]
    %v64 = vld [vmem:[#allocation5 + $0x3c] sm:$0xf]
    %v65 = vld [vmem:[%s2] sm:$0x1]
    %v67 = vperm.slane %v65, 0
    %v71 = vunpack.c.l.b16 %v47
    %v72 = vunpack.c.l.b16 %v48
    %v73 = vpack.c.b16 %v72, %v71
    %v91 = vunpack.c.l.b16 %v49
    %v92 = vunpack.c.l.b16 %v50
    %v93 = vunpack.c.l.b16 %v51
    %v94 = vunpack.c.l.b16 %v52
    %v95 = vunpack.c.l.b16 %v53
    %v96 = vunpack.c.l.b16 %v54
    %v97 = vunpack.c.l.b16 %v55
    %v98 = vunpack.c.l.b16 %v56
    %v99 = vunpack.c.l.b16 %v57
    %v100 = vunpack.c.l.b16 %v58
    %v101 = vunpack.c.l.b16 %v59
    %v102 = vunpack.c.l.b16 %v60
    %v103 = vunpack.c.l.b16 %v61
    %v104 = vunpack.c.l.b16 %v62
    %v105 = vunpack.c.l.b16 %v63
    %v106 = vunpack.c.l.b16 %v64
    %v107 = vpack.c.b16 %v92, %v91
    %v108 = vpack.c.b16 %v94, %v93
    %v109 = vpack.c.b16 %v96, %v95
    %v110 = vpack.c.b16 %v98, %v97
    %v111 = vpack.c.b16 %v100, %v99
    %v112 = vpack.c.b16 %v102, %v101
    %v113 = vpack.c.b16 %v104, %v103
    %v114 = vpack.c.b16 %v106, %v105
    %123 = vmatpush.bf16.msra.mxu0 %v114
    %124 = vmatpush.bf16.msra.mxu0 %v113
    %125 = vmatpush.bf16.msra.mxu0 %v112
    %126 = vmatpush.bf16.msra.mxu0 %v111
    %127 = vmatpush.bf16.msra.mxu0 %v110
    %128 = vmatpush.bf16.msra.mxu0 %v109
    %129 = vmatpush.bf16.msra.mxu0 %v108
    %130 = vmatpush.bf16.msra.mxu0 %v107
    %131 = vmatmul.bf16.gmra.mxu0 %v73
    %v132 = vpop.f32.mrf.mxu0
    %v133 = vadd.f32 %v67, %v132
    %v134 = vpop.f32.mrf.mxu0
    %v135 = vadd.f32 %v67, %v134
    %136 = vdwg.mxu0
    %v137 = vtanh.pop %v133
    %v138 = vtanh.pop %v135
    %139 = vst [vmem:[#allocation7] sm:$0xff] %v137
    %140 = vst [vmem:[#allocation7 + $0x8] sm:$0xff] %v138
    // Predicated region
    $region22: #{tpu_custom_call.1} parent=1 // pred_check
      _
    $region23: #{tpu_custom_call.1} parent=1 // pred_check_branch
      %142 = sbr.rel (0) target = $region25
    $region24: #{tpu_custom_call.1} parent=1 // pred_region
      %144 = vsyncadd [#allocation4], 0
      %s145 = sshll.u32 [#allocation7], 4
      %s146 = int_to_ptr.vmem [resolvable:$true] %s145
      %s147 = sshll.u32 %s3, 4
      %s148 = int_to_ptr.hbm [resolvable:$true] %s147
      %153 = dma.vmem_to_hbm [thread:$0]  %s146, 256, %s148, [#allocation4], 128, 128, 8
    $region25: #{tpu_custom_call.1} parent=1 // pred_fallthru
      _
    // Predicated region
    $region26: #{tpu_custom_call.1} parent=1 // pred_check
      _
    $region27: #{tpu_custom_call.1} parent=1 // pred_check_branch
      %155 = sbr.rel (0) target = $region29
    $region28: #{tpu_custom_call.1} parent=1 // pred_region
      %157 = dma.done [#allocation4], 256
    $region29: #{tpu_custom_call.1} parent=1 // pred_fallthru
      _
    %158 = vsyncpa [#allocation3], 1
    %159 = vsyncpa [#allocation6], 1
    %160 = vsyncpa [#allocation4], 1

</llo_original>
